<compile_context>
chip_gen: v5e
topology: v5e:2x2
jax: 0.10.0
libtpu: 0.0.40
codegen_flags: <defaults>
</compile_context>

<pallas_src>
import functools

import jax
import jax.numpy as jnp
from jax.experimental import pallas as pl
from jax.experimental.pallas import tpu as pltpu

_SUBLANE = 8          # second-to-last-dim granularity for block shapes
_MAX_TILE = 8192      # generous cap; even 8192 rows double-buffered << VMEM


def _mlp_kernel(x_ref, w1_ref, b1_ref, w2_ref, b2_ref,
                w3_ref, b3_ref, w4_ref, b4_ref, o_ref):
    # bf16 MXU matmuls, f32 accumulation, f32 bias/ReLU/sigmoid epilogue.
    x = x_ref[...].astype(jnp.bfloat16)
    # layer1 + relu
    h = jnp.dot(x, w1_ref[...], preferred_element_type=jnp.float32)
    h = jnp.maximum(h + b1_ref[...], 0.0).astype(jnp.bfloat16)
    # layer2 + relu
    h = jnp.dot(h, w2_ref[...], preferred_element_type=jnp.float32)
    h = jnp.maximum(h + b2_ref[...], 0.0).astype(jnp.bfloat16)
    # layer3 + relu
    h = jnp.dot(h, w3_ref[...], preferred_element_type=jnp.float32)
    h = jnp.maximum(h + b3_ref[...], 0.0).astype(jnp.bfloat16)
    # layer5 + sigmoid: exp and the approximate reciprocal both issue on the
    # otherwise-idle EUP slot, keeping the VALU free for the bias add.
    z = jnp.dot(h, w4_ref[...], preferred_element_type=jnp.float32)
    z = z + b4_ref[...]
    sig = pl.reciprocal(1.0 + jnp.exp(-z), approx=True)
    o_ref[...] = sig.astype(o_ref.dtype)


def _num_tensorcores():
    """2 on megacore chips (v7x etc.), else 1.  Grid is a sequential loop on
    one TensorCore, so on single-TC chips the fewest steps is best; on
    megacore chips one step per core lets the 'parallel' axis shard."""
    try:
        kind = jax.devices()[0].device_kind.lower()
        return 2 if any(tag in kind for tag in ("v7", "v5p", "v4")) else 1
    except Exception:
        return 1


def _default_batch_tile(batch, num_cores):
    """Fewest grid steps: exactly `num_cores` steps when that tile fits the
    cap and divides the batch; otherwise the largest power-of-two divisor."""
    if batch % num_cores == 0:
        tb = batch // num_cores
        if tb % _SUBLANE == 0 and tb <= _MAX_TILE:
            return tb
    for cand in (8192, 4096, 2048, 1024, 512, 256, 128, 64, 32, 16, 8):
        if cand <= min(_MAX_TILE, batch) and batch % cand == 0:
            return cand
    return batch


def _resident_spec(shape):
    # Whole-array block, identical index for every grid step (weights/biases):
    # the pipeline keeps these resident and does not re-DMA them.
    return pl.BlockSpec(shape, lambda i: (0,) * len(shape))


@functools.partial(jax.jit, static_argnames=("batch_tile",))
def neuralnetwork_forward(x, params, *, batch_tile=None):
    """Fused forward pass of the 4-layer MLP (relu x3, sigmoid head)."""
    (w1, b1), (w2, b2), (w3, b3), (w4, b4) = params
    B, in_dim = x.shape
    out_dim = w4.shape[1]

    assert B % _SUBLANE == 0, "pad the batch to a multiple of 8"
    tb = _default_batch_tile(B, _num_tensorcores()) if batch_tile is None \
        else batch_tile
    assert B % tb == 0 and tb % _SUBLANE == 0

    grid = (B // tb,)
    y = pl.pallas_call(
        _mlp_kernel,
        out_shape=jax.ShapeDtypeStruct((B, out_dim), x.dtype),
        grid_spec=pltpu.PrefetchScalarGridSpec(
            num_scalar_prefetch=0,
            grid=grid,
            in_specs=[
                pl.BlockSpec((tb, in_dim), lambda i: (i, 0)),   # x tile
                _resident_spec(w1.shape), _resident_spec(b1.shape),
                _resident_spec(w2.shape), _resident_spec(b2.shape),
                _resident_spec(w3.shape), _resident_spec(b3.shape),
                _resident_spec(w4.shape), _resident_spec(b4.shape),
            ],
            # Block last dim == full array last dim (out_dim), so this is a
            # legal, unpadded output block: ~16x less writeback than the
            # previous lane-padded slab, and no wrapper-side slice needed.
            out_specs=pl.BlockSpec((tb, out_dim), lambda i: (i, 0)),
        ),
        compiler_params=pltpu.CompilerParams(
            dimension_semantics=("parallel",),
            # Generous but explicit budget; the real footprint (x tile + tiny
            # weights + (tb, out_dim) output, double-buffered) is << this on
            # every generation incl. v7x's 64 MiB physical VMEM.
            vmem_limit_bytes=32 * 1024 * 1024,
        ),
    )(x, w1, b1, w2, b2, w3, b3, w4, b4)
    return y


def init_params(key, in_dim, n_hidden, out_dim, dtype=jnp.float32):
    """Deterministic PyTorch-style (uniform +/- 1/sqrt(fan_in)) init, stored
    as (in_features, out_features) so forward is `x @ W + b`."""
    dims = [(in_dim, 4 * n_hidden),
            (4 * n_hidden, 2 * n_hidden),
            (2 * n_hidden, n_hidden),
            (n_hidden, out_dim)]
    params = []
    for (fan_in, fan_out) in dims:
        key, kw, kb = jax.random.split(key, 3)
        bound = 1.0 / (fan_in ** 0.5)
        w = jax.random.uniform(kw, (fan_in, fan_out), dtype, -bound, bound)
        b = jax.random.uniform(kb, (1, fan_out), dtype, -bound, bound)
        params.append((w, b))
    return params


def prepare_params(params):
    """One-time wrapper-side conversion: bf16 weights (MXU-native), f32
    biases.  No padding: the (tb, out_dim) output block is stored directly."""
    return tuple((w.astype(jnp.bfloat16), b.astype(jnp.float32))
                 for (w, b) in params)


def reference_forward(x, params):
    (w1, b1), (w2, b2), (w3, b3), (w4, b4) = params
    h = jnp.maximum(x @ w1 + b1, 0.0)
    h = jnp.maximum(h @ w2 + b2, 0.0)
    h = jnp.maximum(h @ w3 + b3, 0.0)
    return jax.nn.sigmoid(h @ w4 + b4)


if __name__ == "__main__":
    # Shapes consistent with the module: in_dim=16, n_hidden=32, out_dim=8.
    # batch=256 -> one grid step on v5e/v6e (single TC), two 128-row steps
    # (one per TensorCore) on megacore chips.
    batch, in_dim, n_hidden, out_dim = 256, 16, 32, 8

    key = jax.random.PRNGKey(0)
    key, kx = jax.random.split(key)
    x = jax.random.normal(kx, (batch, in_dim), dtype=jnp.float32)
    params = init_params(key, in_dim, n_hidden, out_dim)
    prepared = prepare_params(params)

    out = jax.block_until_ready(neuralnetwork_forward(x, prepared))

    ref = reference_forward(x, params)
    assert out.shape == (batch, out_dim)
    # bf16 matmuls + approximate reciprocal vs the f32 reference.
    assert jnp.allclose(out, ref, atol=2e-2, rtol=2e-2), \
        float(jnp.max(jnp.abs(out - ref)))
    print("KERNEL_OK")
</pallas_src>

<mosaic_0001>
module attributes {stable_mosaic.version = 11 : i64} {
  func.func @_mlp_kernel(%arg0: i32, %arg1: memref<256x16xf32, #tpu.memory_space<vmem>>, %arg2: memref<16x128xbf16, #tpu.memory_space<vmem>>, %arg3: memref<1x128xf32, #tpu.memory_space<vmem>>, %arg4: memref<128x64xbf16, #tpu.memory_space<vmem>>, %arg5: memref<1x64xf32, #tpu.memory_space<vmem>>, %arg6: memref<64x32xbf16, #tpu.memory_space<vmem>>, %arg7: memref<1x32xf32, #tpu.memory_space<vmem>>, %arg8: memref<32x8xbf16, #tpu.memory_space<vmem>>, %arg9: memref<1x8xf32, #tpu.memory_space<vmem>>, %arg10: memref<256x8xf32, #tpu.memory_space<vmem>>) attributes {dimension_semantics = [#tpu.dimension_semantics<parallel>], iteration_bounds = array<i64: 1>, scalar_prefetch = 0 : i64, scratch_operands = 0 : i64, tpu.core_type = #tpu.core_type<tc>, window_params = [{transform_indices = @transform_0, window_bounds = array<i64: 256, 16>}, {pipeline_mode = #tpu.pipeline_mode<synchronous>, transform_indices = @transform_1, window_bounds = array<i64: 16, 128>}, {pipeline_mode = #tpu.pipeline_mode<synchronous>, transform_indices = @transform_2, window_bounds = array<i64: 1, 128>}, {pipeline_mode = #tpu.pipeline_mode<synchronous>, transform_indices = @transform_3, window_bounds = array<i64: 128, 64>}, {pipeline_mode = #tpu.pipeline_mode<synchronous>, transform_indices = @transform_4, window_bounds = array<i64: 1, 64>}, {pipeline_mode = #tpu.pipeline_mode<synchronous>, transform_indices = @transform_5, window_bounds = array<i64: 64, 32>}, {pipeline_mode = #tpu.pipeline_mode<synchronous>, transform_indices = @transform_6, window_bounds = array<i64: 1, 32>}, {pipeline_mode = #tpu.pipeline_mode<synchronous>, transform_indices = @transform_7, window_bounds = array<i64: 32, 8>}, {pipeline_mode = #tpu.pipeline_mode<synchronous>, transform_indices = @transform_8, window_bounds = array<i64: 1, 8>}, {transform_indices = @transform_9, window_bounds = array<i64: 256, 8>}]} {
    %c0 = arith.constant 0 : index
    %c0_0 = arith.constant 0 : index
    %0 = vector.load %arg1[%c0, %c0_0] : memref<256x16xf32, #tpu.memory_space<vmem>>, vector<256x16xf32>
    %1 = arith.truncf %0 : vector<256x16xf32> to vector<256x16xbf16>
    %c0_1 = arith.constant 0 : index
    %c0_2 = arith.constant 0 : index
    %2 = vector.load %arg2[%c0_1, %c0_2] : memref<16x128xbf16, #tpu.memory_space<vmem>>, vector<16x128xbf16>
    %cst = arith.constant dense<0.000000e+00> : vector<256x128xf32>
    %3 = tpu.matmul %1, %2, %cst {dimension_numbers = #tpu.dot_dimension_numbers<[1], [0], [0], [1], [0, 0, 1, 1], [], []>} : vector<256x16xbf16>, vector<16x128xbf16>, vector<256x128xf32> -> vector<256x128xf32>
    %c0_3 = arith.constant 0 : index
    %c0_4 = arith.constant 0 : index
    %4 = vector.load %arg3[%c0_3, %c0_4] : memref<1x128xf32, #tpu.memory_space<vmem>>, vector<1x128xf32>
    %5 = vector.broadcast %4 : vector<1x128xf32> to vector<256x128xf32>
    %6 = arith.addf %3, %5 : vector<256x128xf32>
    %cst_5 = arith.constant 0.000000e+00 : f32
    %7 = vector.broadcast %cst_5 : f32 to vector<256x128xf32>
    %8 = arith.maximumf %6, %7 : vector<256x128xf32>
    %9 = arith.truncf %8 : vector<256x128xf32> to vector<256x128xbf16>
    %c0_6 = arith.constant 0 : index
    %c0_7 = arith.constant 0 : index
    %10 = vector.load %arg4[%c0_6, %c0_7] : memref<128x64xbf16, #tpu.memory_space<vmem>>, vector<128x64xbf16>
    %cst_8 = arith.constant dense<0.000000e+00> : vector<256x64xf32>
    %11 = tpu.matmul %9, %10, %cst_8 {dimension_numbers = #tpu.dot_dimension_numbers<[1], [0], [0], [1], [0, 0, 1, 1], [], []>} : vector<256x128xbf16>, vector<128x64xbf16>, vector<256x64xf32> -> vector<256x64xf32>
    %c0_9 = arith.constant 0 : index
    %c0_10 = arith.constant 0 : index
    %12 = vector.load %arg5[%c0_9, %c0_10] : memref<1x64xf32, #tpu.memory_space<vmem>>, vector<1x64xf32>
    %13 = vector.broadcast %12 : vector<1x64xf32> to vector<256x64xf32>
    %14 = arith.addf %11, %13 : vector<256x64xf32>
    %cst_11 = arith.constant 0.000000e+00 : f32
    %15 = vector.broadcast %cst_11 : f32 to vector<256x64xf32>
    %16 = arith.maximumf %14, %15 : vector<256x64xf32>
    %17 = arith.truncf %16 : vector<256x64xf32> to vector<256x64xbf16>
    %c0_12 = arith.constant 0 : index
    %c0_13 = arith.constant 0 : index
    %18 = vector.load %arg6[%c0_12, %c0_13] : memref<64x32xbf16, #tpu.memory_space<vmem>>, vector<64x32xbf16>
    %cst_14 = arith.constant dense<0.000000e+00> : vector<256x32xf32>
    %19 = tpu.matmul %17, %18, %cst_14 {dimension_numbers = #tpu.dot_dimension_numbers<[1], [0], [0], [1], [0, 0, 1, 1], [], []>} : vector<256x64xbf16>, vector<64x32xbf16>, vector<256x32xf32> -> vector<256x32xf32>
    %c0_15 = arith.constant 0 : index
    %c0_16 = arith.constant 0 : index
    %20 = vector.load %arg7[%c0_15, %c0_16] : memref<1x32xf32, #tpu.memory_space<vmem>>, vector<1x32xf32>
    %21 = vector.broadcast %20 : vector<1x32xf32> to vector<256x32xf32>
    %22 = arith.addf %19, %21 : vector<256x32xf32>
    %cst_17 = arith.constant 0.000000e+00 : f32
    %23 = vector.broadcast %cst_17 : f32 to vector<256x32xf32>
    %24 = arith.maximumf %22, %23 : vector<256x32xf32>
    %25 = arith.truncf %24 : vector<256x32xf32> to vector<256x32xbf16>
    %c0_18 = arith.constant 0 : index
    %c0_19 = arith.constant 0 : index
    %26 = vector.load %arg8[%c0_18, %c0_19] : memref<32x8xbf16, #tpu.memory_space<vmem>>, vector<32x8xbf16>
    %cst_20 = arith.constant dense<0.000000e+00> : vector<256x8xf32>
    %27 = tpu.matmul %25, %26, %cst_20 {dimension_numbers = #tpu.dot_dimension_numbers<[1], [0], [0], [1], [0, 0, 1, 1], [], []>} : vector<256x32xbf16>, vector<32x8xbf16>, vector<256x8xf32> -> vector<256x8xf32>
    %c0_21 = arith.constant 0 : index
    %c0_22 = arith.constant 0 : index
    %28 = vector.load %arg9[%c0_21, %c0_22] : memref<1x8xf32, #tpu.memory_space<vmem>>, vector<1x8xf32>
    %29 = vector.broadcast %28 : vector<1x8xf32> to vector<256x8xf32>
    %30 = arith.addf %27, %29 : vector<256x8xf32>
    %cst_23 = arith.constant 0.000000e+00 : f32
    %31 = vector.broadcast %cst_23 : f32 to vector<256x8xf32>
    %32 = arith.subf %31, %30 : vector<256x8xf32>
    %33 = math.exp %32 : vector<256x8xf32>
    %cst_24 = arith.constant 1.000000e+00 : f32
    %34 = vector.broadcast %cst_24 : f32 to vector<256x8xf32>
    %35 = arith.addf %34, %33 : vector<256x8xf32>
    %36 = tpu.reciprocal %35 {approx = true} : vector<256x8xf32> -> vector<256x8xf32>
    %c0_25 = arith.constant 0 : index
    %c0_26 = arith.constant 0 : index
    %37 = vector.load %arg10[%c0_25, %c0_26] : memref<256x8xf32, #tpu.memory_space<vmem>>, vector<256x8xf32>
    tpu.vector_store %arg10[%c0_25, %c0_26], %36 {strides = array<i32>} : memref<256x8xf32, #tpu.memory_space<vmem>>, vector<256x8xf32>,
    return
  }
  func.func @transform_0(%arg0: i32) -> (i32, i32) {
    %c0_i32 = arith.constant 0 : i32
    %c0_i32_0 = arith.constant 0 : i32
    return %arg0, %c0_i32 : i32, i32
  }
  func.func @transform_1(%arg0: i32) -> (i32, i32) {
    %c0_i32 = arith.constant 0 : i32
    %c0_i32_0 = arith.constant 0 : i32
    %c0_i32_1 = arith.constant 0 : i32
    return %c0_i32, %c0_i32_0 : i32, i32
  }
  func.func @transform_2(%arg0: i32) -> (i32, i32) {
    %c0_i32 = arith.constant 0 : i32
    %c0_i32_0 = arith.constant 0 : i32
    %c0_i32_1 = arith.constant 0 : i32
    return %c0_i32, %c0_i32_0 : i32, i32
  }
  func.func @transform_3(%arg0: i32) -> (i32, i32) {
    %c0_i32 = arith.constant 0 : i32
    %c0_i32_0 = arith.constant 0 : i32
    %c0_i32_1 = arith.constant 0 : i32
    return %c0_i32, %c0_i32_0 : i32, i32
  }
  func.func @transform_4(%arg0: i32) -> (i32, i32) {
    %c0_i32 = arith.constant 0 : i32
    %c0_i32_0 = arith.constant 0 : i32
    %c0_i32_1 = arith.constant 0 : i32
    return %c0_i32, %c0_i32_0 : i32, i32
  }
  func.func @transform_5(%arg0: i32) -> (i32, i32) {
    %c0_i32 = arith.constant 0 : i32
    %c0_i32_0 = arith.constant 0 : i32
    %c0_i32_1 = arith.constant 0 : i32
    return %c0_i32, %c0_i32_0 : i32, i32
  }
  func.func @transform_6(%arg0: i32) -> (i32, i32) {
    %c0_i32 = arith.constant 0 : i32
    %c0_i32_0 = arith.constant 0 : i32
    %c0_i32_1 = arith.constant 0 : i32
    return %c0_i32, %c0_i32_0 : i32, i32
  }
  func.func @transform_7(%arg0: i32) -> (i32, i32) {
    %c0_i32 = arith.constant 0 : i32
    %c0_i32_0 = arith.constant 0 : i32
    %c0_i32_1 = arith.constant 0 : i32
    return %c0_i32, %c0_i32_0 : i32, i32
  }
  func.func @transform_8(%arg0: i32) -> (i32, i32) {
    %c0_i32 = arith.constant 0 : i32
    %c0_i32_0 = arith.constant 0 : i32
    %c0_i32_1 = arith.constant 0 : i32
    return %c0_i32, %c0_i32_0 : i32, i32
  }
  func.func @transform_9(%arg0: i32) -> (i32, i32) {
    %c0_i32 = arith.constant 0 : i32
    %c0_i32_0 = arith.constant 0 : i32
    return %arg0, %c0_i32 : i32, i32
  }
}

</mosaic_0001>

<llo_original>
// kernel: neuralnetwork_forward.1
$region0: #{neuralnetwork_forward.1}
  #allocation0 [shape = 'u32[]', space=smem, size = 0x4, offset = 0x4, fixed_abs, tag = 'smem constant byte address 0x4 - core index']
  #allocation1 [shape = 'u32[72,128]{1,0:T(1,128)}', space=vmem, size = 0x9000, scoped, tag = 'internal scratch']
  %s0 = inlined_call_operand.vmem [shape: f32[256,16], index: 0, kind: input, shape index: {}]
  %s1 = inlined_call_operand.vmem [shape: bf16[16,128], index: 1, kind: input, shape index: {}]
  %s2 = inlined_call_operand.vmem [shape: f32[1,128], index: 2, kind: input, shape index: {}]
  %s3 = inlined_call_operand.vmem [shape: bf16[128,64], index: 3, kind: input, shape index: {}]
  %s4 = inlined_call_operand.vmem [shape: f32[1,64], index: 4, kind: input, shape index: {}]
  %s5 = inlined_call_operand.vmem [shape: bf16[64,32], index: 5, kind: input, shape index: {}]
  %s6 = inlined_call_operand.vmem [shape: f32[1,32], index: 6, kind: input, shape index: {}]
  %s7 = inlined_call_operand.vmem [shape: bf16[32,8], index: 7, kind: input, shape index: {}]
  %s8 = inlined_call_operand.vmem [shape: f32[1,8], index: 8, kind: input, shape index: {}]
  %s9 = inlined_call_operand.vmem [shape: f32[256,8], index: 9, kind: output, shape index: {}]
  %s10 = sld [smem:[#allocation0]]
  $region46: #{neuralnetwork_forward.1} parent=0
    _
  %s12 = ssub.s32 1, %s10
  %s13 = scalar_select 0, %s12, %s10
  // Predicated region
  $region2: #{neuralnetwork_forward.1} parent=0 // pred_check
    _
  $region3: #{neuralnetwork_forward.1} parent=0 // pred_check_branch
    %15 = sbr.rel (0) target = $region5
  $region4: #{neuralnetwork_forward.1} parent=0 // pred_region
    _
  $region5: #{neuralnetwork_forward.1} parent=0 // pred_fallthru
    _
  // Predicated region
  $region6: #{neuralnetwork_forward.1} parent=0 // pred_check
    _
  $region7: #{neuralnetwork_forward.1} parent=0 // pred_check_branch
    %17 = sbr.rel (0) target = $region9
  $region8: #{neuralnetwork_forward.1} parent=0 // pred_region
    _
  $region9: #{neuralnetwork_forward.1} parent=0 // pred_fallthru
    _
  // Predicated region
  $region10: #{neuralnetwork_forward.1} parent=0 // pred_check
    _
  $region11: #{neuralnetwork_forward.1} parent=0 // pred_check_branch
    %19 = sbr.rel (0) target = $region13
  $region12: #{neuralnetwork_forward.1} parent=0 // pred_region
    _
  $region13: #{neuralnetwork_forward.1} parent=0 // pred_fallthru
    _
  // Predicated region
  $region14: #{neuralnetwork_forward.1} parent=0 // pred_check
    _
  $region15: #{neuralnetwork_forward.1} parent=0 // pred_check_branch
    %21 = sbr.rel (0) target = $region17
  $region16: #{neuralnetwork_forward.1} parent=0 // pred_region
    _
  $region17: #{neuralnetwork_forward.1} parent=0 // pred_fallthru
    _
  // Predicated region
  $region18: #{neuralnetwork_forward.1} parent=0 // pred_check
    _
  $region19: #{neuralnetwork_forward.1} parent=0 // pred_check_branch
    %23 = sbr.rel (0) target = $region21
  $region20: #{neuralnetwork_forward.1} parent=0 // pred_region
    _
  $region21: #{neuralnetwork_forward.1} parent=0 // pred_fallthru
    _
  // Predicated region
  $region22: #{neuralnetwork_forward.1} parent=0 // pred_check
    _
  $region23: #{neuralnetwork_forward.1} parent=0 // pred_check_branch
    %25 = sbr.rel (0) target = $region25
  $region24: #{neuralnetwork_forward.1} parent=0 // pred_region
    _
  $region25: #{neuralnetwork_forward.1} parent=0 // pred_fallthru
    _
  // Predicated region
  $region26: #{neuralnetwork_forward.1} parent=0 // pred_check
    _
  $region27: #{neuralnetwork_forward.1} parent=0 // pred_check_branch
    %27 = sbr.rel (0) target = $region29
  $region28: #{neuralnetwork_forward.1} parent=0 // pred_region
    _
  $region29: #{neuralnetwork_forward.1} parent=0 // pred_fallthru
    _
  // Predicated region
  $region30: #{neuralnetwork_forward.1} parent=0 // pred_check
    _
  $region31: #{neuralnetwork_forward.1} parent=0 // pred_check_branch
    %29 = sbr.rel (0) target = $region33
  $region32: #{neuralnetwork_forward.1} parent=0 // pred_region
    _
  $region33: #{neuralnetwork_forward.1} parent=0 // pred_fallthru
    _
  // Predicated region
  $region34: #{neuralnetwork_forward.1} parent=0 // pred_check
    _
  $region35: #{neuralnetwork_forward.1} parent=0 // pred_check_branch
    %31 = sbr.rel (0) target = $region37
  $region36: #{neuralnetwork_forward.1} parent=0 // pred_region
    _
  $region37: #{neuralnetwork_forward.1} parent=0 // pred_fallthru
    _
  %v33 = vld [vmem:[%s0] sm:$0xff]
  %v34 = vld [vmem:[%s0 + $0x8] sm:$0xff]
  %v35 = vld [vmem:[%s0 + $0x10] sm:$0xff]
  %v36 = vld [vmem:[%s0 + $0x18] sm:$0xff]
  %v37 = vld [vmem:[%s0 + $0x20] sm:$0xff]
  %v38 = vld [vmem:[%s0 + $0x28] sm:$0xff]
  %v39 = vld [vmem:[%s0 + $0x30] sm:$0xff]
  %v40 = vld [vmem:[%s0 + $0x38] sm:$0xff]
  %v41 = vld [vmem:[%s0 + $0x40] sm:$0xff]
  %v42 = vld [vmem:[%s0 + $0x48] sm:$0xff]
  %v43 = vld [vmem:[%s0 + $0x50] sm:$0xff]
  %v44 = vld [vmem:[%s0 + $0x58] sm:$0xff]
  %v45 = vld [vmem:[%s0 + $0x60] sm:$0xff]
  %v46 = vld [vmem:[%s0 + $0x68] sm:$0xff]
  %v47 = vld [vmem:[%s0 + $0x70] sm:$0xff]
  %v48 = vld [vmem:[%s0 + $0x78] sm:$0xff]
  %v49 = vld [vmem:[%s0 + $0x80] sm:$0xff]
  %v50 = vld [vmem:[%s0 + $0x88] sm:$0xff]
  %v51 = vld [vmem:[%s0 + $0x90] sm:$0xff]
  %v52 = vld [vmem:[%s0 + $0x98] sm:$0xff]
  %v53 = vld [vmem:[%s0 + $0xa0] sm:$0xff]
  %v54 = vld [vmem:[%s0 + $0xa8] sm:$0xff]
  %v55 = vld [vmem:[%s0 + $0xb0] sm:$0xff]
  %v56 = vld [vmem:[%s0 + $0xb8] sm:$0xff]
  %v57 = vld [vmem:[%s0 + $0xc0] sm:$0xff]
  %v58 = vld [vmem:[%s0 + $0xc8] sm:$0xff]
  %v59 = vld [vmem:[%s0 + $0xd0] sm:$0xff]
  %v60 = vld [vmem:[%s0 + $0xd8] sm:$0xff]
  %v61 = vld [vmem:[%s0 + $0xe0] sm:$0xff]
  %v62 = vld [vmem:[%s0 + $0xe8] sm:$0xff]
  %v63 = vld [vmem:[%s0 + $0xf0] sm:$0xff]
  %v64 = vld [vmem:[%s0 + $0xf8] sm:$0xff]
  %v65 = vpack.c.bf16 %v34, %v33
  %v66 = vpack.c.bf16 %v36, %v35
  %v67 = vpack.c.bf16 %v38, %v37
  %v68 = vpack.c.bf16 %v40, %v39
  %v69 = vpack.c.bf16 %v42, %v41
  %v70 = vpack.c.bf16 %v44, %v43
  %v71 = vpack.c.bf16 %v46, %v45
  %v72 = vpack.c.bf16 %v48, %v47
  %v73 = vpack.c.bf16 %v50, %v49
  %v74 = vpack.c.bf16 %v52, %v51
  %v75 = vpack.c.bf16 %v54, %v53
  %v76 = vpack.c.bf16 %v56, %v55
  %v77 = vpack.c.bf16 %v58, %v57
  %v78 = vpack.c.bf16 %v60, %v59
  %v79 = vpack.c.bf16 %v62, %v61
  %v80 = vpack.c.bf16 %v64, %v63
  %v81 = vld [vmem:[%s1] sm:$0xf]
  %v82 = vld [vmem:[%s1 + $0x4] sm:$0xf]
  %v83 = vld [vmem:[%s2] sm:$0x1]
  %v85 = vperm.slane %v83, 0
  %v89 = vunpack.c.l.b16 %v81
  %v90 = vunpack.c.l.b16 %v82
  %v91 = vpack.c.b16 %v90, %v89
  %vm93 = vcmask 130048
  %v95 = vsel %vm93, %v65, 0
  %v98 = vsel %vm93, %v66, 0
  %v101 = vsel %vm93, %v67, 0
  %v104 = vsel %vm93, %v68, 0
  %v107 = vsel %vm93, %v69, 0
  %v110 = vsel %vm93, %v70, 0
  %v113 = vsel %vm93, %v71, 0
  %v116 = vsel %vm93, %v72, 0
  %v119 = vsel %vm93, %v73, 0
  %v122 = vsel %vm93, %v74, 0
  %v125 = vsel %vm93, %v75, 0
  %v128 = vsel %vm93, %v76, 0
  %v131 = vsel %vm93, %v77, 0
  %v134 = vsel %vm93, %v78, 0
  %v137 = vsel %vm93, %v79, 0
  %v140 = vsel %vm93, %v80, 0
  %142 = vmatpush.bf16.msra.mxu0 0
  %143 = vmatpush.bf16.msra.mxu0 0
  %144 = vmatpush.bf16.msra.mxu0 0
  %145 = vmatpush.bf16.msra.mxu0 0
  %146 = vmatpush.bf16.msra.mxu0 0
  %147 = vmatpush.bf16.msra.mxu0 0
  %148 = vmatpush.bf16.msra.mxu0 0
  %149 = vmatpush.bf16.msra.mxu0 %v91
  %150 = vmatmul.bf16.gmra.mxu0 %v95
  %v151 = vpop.f32.mrf.mxu0
  %v152 = vadd.f32 %v85, %v151
  %v153 = vpop.f32.mrf.mxu0
  %v154 = vadd.f32 %v85, %v153
  %155 = vmatmul.bf16.gmra.mxu0 %v98
  %v156 = vpop.f32.mrf.mxu0
  %v157 = vadd.f32 %v85, %v156
  %v158 = vpop.f32.mrf.mxu0
  %v159 = vadd.f32 %v85, %v158
  %160 = vmatmul.bf16.gmra.mxu0 %v101
  %v161 = vpop.f32.mrf.mxu0
  %v162 = vadd.f32 %v85, %v161
  %v163 = vpop.f32.mrf.mxu0
  %v164 = vadd.f32 %v85, %v163
  %165 = vmatmul.bf16.gmra.mxu0 %v104
  %v166 = vpop.f32.mrf.mxu0
  %v167 = vadd.f32 %v85, %v166
  %v168 = vpop.f32.mrf.mxu0
  %v169 = vadd.f32 %v85, %v168
  %170 = vmatmul.bf16.gmra.mxu0 %v107
  %v171 = vpop.f32.mrf.mxu0
  %v172 = vadd.f32 %v85, %v171
  %v173 = vpop.f32.mrf.mxu0
  %v174 = vadd.f32 %v85, %v173
  %175 = vmatmul.bf16.gmra.mxu0 %v110
  %v176 = vpop.f32.mrf.mxu0
  %v177 = vadd.f32 %v85, %v176
  %v178 = vpop.f32.mrf.mxu0
  %v179 = vadd.f32 %v85, %v178
  %180 = vmatmul.bf16.gmra.mxu0 %v113
  %v181 = vpop.f32.mrf.mxu0
  %v182 = vadd.f32 %v85, %v181
  %v183 = vpop.f32.mrf.mxu0
  %v184 = vadd.f32 %v85, %v183
  %185 = vmatmul.bf16.gmra.mxu0 %v116
  %v186 = vpop.f32.mrf.mxu0
  %v187 = vadd.f32 %v85, %v186
  %v188 = vpop.f32.mrf.mxu0
  %v189 = vadd.f32 %v85, %v188
  %190 = vmatmul.bf16.gmra.mxu0 %v119
  %v191 = vpop.f32.mrf.mxu0
  %v192 = vadd.f32 %v85, %v191
  %v193 = vpop.f32.mrf.mxu0
  %v194 = vadd.f32 %v85, %v193
  %195 = vmatmul.bf16.gmra.mxu0 %v122
  %v196 = vpop.f32.mrf.mxu0
  %v197 = vadd.f32 %v85, %v196
  %v198 = vpop.f32.mrf.mxu0
  %v199 = vadd.f32 %v85, %v198
  %200 = vmatmul.bf16.gmra.mxu0 %v125
  %v201 = vpop.f32.mrf.mxu0
  %v202 = vadd.f32 %v85, %v201
  %v203 = vpop.f32.mrf.mxu0
  %v204 = vadd.f32 %v85, %v203
  %205 = vmatmul.bf16.gmra.mxu0 %v128
  %v206 = vpop.f32.mrf.mxu0
  %v207 = vadd.f32 %v85, %v206
  %v208 = vpop.f32.mrf.mxu0
  %v209 = vadd.f32 %v85, %v208
  %210 = vmatmul.bf16.gmra.mxu0 %v131
  %v211 = vpop.f32.mrf.mxu0
  %v212 = vadd.f32 %v85, %v211
  %v213 = vpop.f32.mrf.mxu0
  %v214 = vadd.f32 %v85, %v213
  %215 = vmatmul.bf16.gmra.mxu0 %v134
  %v216 = vpop.f32.mrf.mxu0
  %v217 = vadd.f32 %v85, %v216
  %v218 = vpop.f32.mrf.mxu0
  %v219 = vadd.f32 %v85, %v218
  %220 = vmatmul.bf16.gmra.mxu0 %v137
  %v221 = vpop.f32.mrf.mxu0
  %v222 = vadd.f32 %v85, %v221
  %v223 = vpop.f32.mrf.mxu0
  %v224 = vadd.f32 %v85, %v223
  %225 = vmatmul.bf16.gmra.mxu0 %v140
  %v226 = vpop.f32.mrf.mxu0
  %v227 = vadd.f32 %v85, %v226
  %v228 = vpop.f32.mrf.mxu0
  %v229 = vadd.f32 %v85, %v228
  %230 = vdwg.mxu0
  %v231 = vmax.f32 %v152, 0.0
  %v232 = vmax.f32 %v154, 0.0
  %v233 = vmax.f32 %v157, 0.0
  %v234 = vmax.f32 %v159, 0.0
  %v235 = vmax.f32 %v162, 0.0
  %v236 = vmax.f32 %v164, 0.0
  %v237 = vmax.f32 %v167, 0.0
  %v238 = vmax.f32 %v169, 0.0
  %v239 = vmax.f32 %v172, 0.0
  %v240 = vmax.f32 %v174, 0.0
  %v241 = vmax.f32 %v177, 0.0
  %v242 = vmax.f32 %v179, 0.0
  %v243 = vmax.f32 %v182, 0.0
  %v244 = vmax.f32 %v184, 0.0
  %v245 = vmax.f32 %v187, 0.0
  %v246 = vmax.f32 %v189, 0.0
  %v247 = vmax.f32 %v192, 0.0
  %v248 = vmax.f32 %v194, 0.0
  %v249 = vmax.f32 %v197, 0.0
  %v250 = vmax.f32 %v199, 0.0
  %v251 = vmax.f32 %v202, 0.0
  %v252 = vmax.f32 %v204, 0.0
  %v253 = vmax.f32 %v207, 0.0
  %v254 = vmax.f32 %v209, 0.0
  %v255 = vmax.f32 %v212, 0.0
  %v256 = vmax.f32 %v214, 0.0
  %v257 = vmax.f32 %v217, 0.0
  %v258 = vmax.f32 %v219, 0.0
  %v259 = vmax.f32 %v222, 0.0
  %v260 = vmax.f32 %v224, 0.0
  %v261 = vmax.f32 %v227, 0.0
  %v262 = vmax.f32 %v229, 0.0
  %v263 = vpack.c.bf16 %v232, %v231
  %v264 = vpack.c.bf16 %v234, %v233
  %v265 = vpack.c.bf16 %v236, %v235
  %v266 = vpack.c.bf16 %v238, %v237
  %v267 = vpack.c.bf16 %v240, %v239
  %v268 = vpack.c.bf16 %v242, %v241
  %v269 = vpack.c.bf16 %v244, %v243
  %v270 = vpack.c.bf16 %v246, %v245
  %v271 = vpack.c.bf16 %v248, %v247
  %v272 = vpack.c.bf16 %v250, %v249
  %v273 = vpack.c.bf16 %v252, %v251
  %v274 = vpack.c.bf16 %v254, %v253
  %v275 = vpack.c.bf16 %v256, %v255
  %v276 = vpack.c.bf16 %v258, %v257
  %v277 = vpack.c.bf16 %v260, %v259
  %v278 = vpack.c.bf16 %v262, %v261
  %v279 = vld [vmem:[%s3] sm:$0xf]
  %v280 = vld [vmem:[%s3 + $0x4] sm:$0xf]
  %v281 = vld [vmem:[%s3 + $0x8] sm:$0xf]
  %v282 = vld [vmem:[%s3 + $0xc] sm:$0xf]
  %v283 = vld [vmem:[%s3 + $0x10] sm:$0xf]
  %v284 = vld [vmem:[%s3 + $0x14] sm:$0xf]
  %v285 = vld [vmem:[%s3 + $0x18] sm:$0xf]
  %v286 = vld [vmem:[%s3 + $0x1c] sm:$0xf]
  %v287 = vld [vmem:[%s3 + $0x20] sm:$0xf]
  %v288 = vld [vmem:[%s3 + $0x24] sm:$0xf]
  %v289 = vld [vmem:[%s3 + $0x28] sm:$0xf]
  %v290 = vld [vmem:[%s3 + $0x2c] sm:$0xf]
  %v291 = vld [vmem:[%s3 + $0x30] sm:$0xf]
  %v292 = vld [vmem:[%s3 + $0x34] sm:$0xf]
  %v293 = vld [vmem:[%s3 + $0x38] sm:$0xf]
  %v294 = vld [vmem:[%s3 + $0x3c] sm:$0xf]
  %v295 = vld [vmem:[%s4] sm:$0x1]
  %v297 = vperm.slane %v295, 0
  %v315 = vunpack.c.l.b16 %v279
  %v316 = vunpack.c.l.b16 %v280
  %v317 = vunpack.c.l.b16 %v281
  %v318 = vunpack.c.l.b16 %v282
  %v319 = vunpack.c.l.b16 %v283
  %v320 = vunpack.c.l.b16 %v284
  %v321 = vunpack.c.l.b16 %v285
  %v322 = vunpack.c.l.b16 %v286
  %v323 = vunpack.c.l.b16 %v287
  %v324 = vunpack.c.l.b16 %v288
  %v325 = vunpack.c.l.b16 %v289
  %v326 = vunpack.c.l.b16 %v290
  %v327 = vunpack.c.l.b16 %v291
  %v328 = vunpack.c.l.b16 %v292
  %v329 = vunpack.c.l.b16 %v293
  %v330 = vunpack.c.l.b16 %v294
  %v331 = vpack.c.b16 %v316, %v315
  %v332 = vpack.c.b16 %v318, %v317
  %v333 = vpack.c.b16 %v320, %v319
  %v334 = vpack.c.b16 %v322, %v321
  %v335 = vpack.c.b16 %v324, %v323
  %v336 = vpack.c.b16 %v326, %v325
  %v337 = vpack.c.b16 %v328, %v327
  %v338 = vpack.c.b16 %v330, %v329
  %347 = vmatpush.bf16.msra.mxu0 %v338
  %348 = vmatpush.bf16.msra.mxu0 %v337
  %349 = vmatpush.bf16.msra.mxu0 %v336
  %350 = vmatpush.bf16.msra.mxu0 %v335
  %351 = vmatpush.bf16.msra.mxu0 %v334
  %352 = vmatpush.bf16.msra.mxu0 %v333
  %353 = vmatpush.bf16.msra.mxu0 %v332
  %354 = vmatpush.bf16.msra.mxu0 %v331
  %355 = vmatmul.bf16.gmra.mxu0 %v263
  %v356 = vpop.f32.mrf.mxu0
  %v357 = vadd.f32 %v297, %v356
  %v358 = vpop.f32.mrf.mxu0
  %v359 = vadd.f32 %v297, %v358
  %360 = vmatmul.bf16.gmra.mxu0 %v264
  %v361 = vpop.f32.mrf.mxu0
  %v362 = vadd.f32 %v297, %v361
  %v363 = vpop.f32.mrf.mxu0
  %v364 = vadd.f32 %v297, %v363
  %365 = vmatmul.bf16.gmra.mxu0 %v265
  %v366 = vpop.f32.mrf.mxu0
  %v367 = vadd.f32 %v297, %v366
  %v368 = vpop.f32.mrf.mxu0
  %v369 = vadd.f32 %v297, %v368
  %370 = vmatmul.bf16.gmra.mxu0 %v266
  %v371 = vpop.f32.mrf.mxu0
  %v372 = vadd.f32 %v297, %v371
  %v373 = vpop.f32.mrf.mxu0
  %v374 = vadd.f32 %v297, %v373
  %375 = vmatmul.bf16.gmra.mxu0 %v267
  %v376 = vpop.f32.mrf.mxu0
  %v377 = vadd.f32 %v297, %v376
  %v378 = vpop.f32.mrf.mxu0
  %v379 = vadd.f32 %v297, %v378
  %380 = vmatmul.bf16.gmra.mxu0 %v268
  %v381 = vpop.f32.mrf.mxu0
  %v382 = vadd.f32 %v297, %v381
  %v383 = vpop.f32.mrf.mxu0
  %v384 = vadd.f32 %v297, %v383
  %385 = vmatmul.bf16.gmra.mxu0 %v269
  %v386 = vpop.f32.mrf.mxu0
  %v387 = vadd.f32 %v297, %v386
  %v388 = vpop.f32.mrf.mxu0
  %v389 = vadd.f32 %v297, %v388
  %390 = vmatmul.bf16.gmra.mxu0 %v270
  %v391 = vpop.f32.mrf.mxu0
  %v392 = vadd.f32 %v297, %v391
  %v393 = vpop.f32.mrf.mxu0
  %v394 = vadd.f32 %v297, %v393
  %395 = vmatmul.bf16.gmra.mxu0 %v271
  %v396 = vpop.f32.mrf.mxu0
  %v397 = vadd.f32 %v297, %v396
  %v398 = vpop.f32.mrf.mxu0
  %v399 = vadd.f32 %v297, %v398
  %400 = vmatmul.bf16.gmra.mxu0 %v272
  %v401 = vpop.f32.mrf.mxu0
  %v402 = vadd.f32 %v297, %v401
  %v403 = vpop.f32.mrf.mxu0
  %v404 = vadd.f32 %v297, %v403
  %405 = vmatmul.bf16.gmra.mxu0 %v273
  %v406 = vpop.f32.mrf.mxu0
  %v407 = vadd.f32 %v297, %v406
  %v408 = vpop.f32.mrf.mxu0
  %v409 = vadd.f32 %v297, %v408
  %410 = vmatmul.bf16.gmra.mxu0 %v274
  %v411 = vpop.f32.mrf.mxu0
  %v412 = vadd.f32 %v297, %v411
  %v413 = vpop.f32.mrf.mxu0
  %v414 = vadd.f32 %v297, %v413
  %415 = vmatmul.bf16.gmra.mxu0 %v275
  %v416 = vpop.f32.mrf.mxu0
  %v417 = vadd.f32 %v297, %v416
  %v418 = vpop.f32.mrf.mxu0
  %v419 = vadd.f32 %v297, %v418
  %420 = vmatmul.bf16.gmra.mxu0 %v276
  %v421 = vpop.f32.mrf.mxu0
  %v422 = vadd.f32 %v297, %v421
  %v423 = vpop.f32.mrf.mxu0
  %v424 = vadd.f32 %v297, %v423
  %425 = vmatmul.bf16.gmra.mxu0 %v277
  %v426 = vpop.f32.mrf.mxu0
  %v427 = vadd.f32 %v297, %v426
  %v428 = vpop.f32.mrf.mxu0
  %v429 = vadd.f32 %v297, %v428
  %430 = vmatmul.bf16.gmra.mxu0 %v278
  %v431 = vpop.f32.mrf.mxu0
  %v432 = vadd.f32 %v297, %v431
  %v433 = vpop.f32.mrf.mxu0
  %v434 = vadd.f32 %v297, %v433
  %435 = vdwg.mxu0
  %v436 = vmax.f32 %v357, 0.0
  %v437 = vmax.f32 %v359, 0.0
  %v438 = vmax.f32 %v362, 0.0
  %v439 = vmax.f32 %v364, 0.0
  %v440 = vmax.f32 %v367, 0.0
  %v441 = vmax.f32 %v369, 0.0
  %v442 = vmax.f32 %v372, 0.0
  %v443 = vmax.f32 %v374, 0.0
  %v444 = vmax.f32 %v377, 0.0
  %v445 = vmax.f32 %v379, 0.0
  %v446 = vmax.f32 %v382, 0.0
  %v447 = vmax.f32 %v384, 0.0
  %v448 = vmax.f32 %v387, 0.0
  %v449 = vmax.f32 %v389, 0.0
  %v450 = vmax.f32 %v392, 0.0
  %v451 = vmax.f32 %v394, 0.0
  %v452 = vmax.f32 %v397, 0.0
  %v453 = vmax.f32 %v399, 0.0
  %v454 = vmax.f32 %v402, 0.0
  %v455 = vmax.f32 %v404, 0.0
  %v456 = vmax.f32 %v407, 0.0
  %v457 = vmax.f32 %v409, 0.0
  %v458 = vmax.f32 %v412, 0.0
  %v459 = vmax.f32 %v414, 0.0
  %v460 = vmax.f32 %v417, 0.0
  %v461 = vmax.f32 %v419, 0.0
  %v462 = vmax.f32 %v422, 0.0
  %v463 = vmax.f32 %v424, 0.0
  %v464 = vmax.f32 %v427, 0.0
  %v465 = vmax.f32 %v429, 0.0
  %v466 = vmax.f32 %v432, 0.0
  %v467 = vmax.f32 %v434, 0.0
  %v468 = vpack.c.bf16 %v437, %v436
  %v469 = vpack.c.bf16 %v439, %v438
  %v470 = vpack.c.bf16 %v441, %v440
  %v471 = vpack.c.bf16 %v443, %v442
  %v472 = vpack.c.bf16 %v445, %v444
  %v473 = vpack.c.bf16 %v447, %v446
  %v474 = vpack.c.bf16 %v449, %v448
  %v475 = vpack.c.bf16 %v451, %v450
  %v476 = vpack.c.bf16 %v453, %v452
  %v477 = vpack.c.bf16 %v455, %v454
  %v478 = vpack.c.bf16 %v457, %v456
  %v479 = vpack.c.bf16 %v459, %v458
  %v480 = vpack.c.bf16 %v461, %v460
  %v481 = vpack.c.bf16 %v463, %v462
  %v482 = vpack.c.bf16 %v465, %v464
  %v483 = vpack.c.bf16 %v467, %v466
  %v484 = vld [vmem:[%s5] sm:$0xf]
  %v485 = vld [vmem:[%s5 + $0x4] sm:$0xf]
  %v486 = vld [vmem:[%s5 + $0x8] sm:$0xf]
  %v487 = vld [vmem:[%s5 + $0xc] sm:$0xf]
  %v488 = vld [vmem:[%s5 + $0x10] sm:$0xf]
  %v489 = vld [vmem:[%s5 + $0x14] sm:$0xf]
  %v490 = vld [vmem:[%s5 + $0x18] sm:$0xf]
  %v491 = vld [vmem:[%s5 + $0x1c] sm:$0xf]
  %v492 = vld [vmem:[%s6] sm:$0x1]
  %v494 = vperm.slane %v492, 0
  %v504 = vunpack.c.l.b16 %v484
  %v505 = vunpack.c.l.b16 %v485
  %v506 = vunpack.c.l.b16 %v486
  %v507 = vunpack.c.l.b16 %v487
  %v508 = vunpack.c.l.b16 %v488
  %v509 = vunpack.c.l.b16 %v489
  %v510 = vunpack.c.l.b16 %v490
  %v511 = vunpack.c.l.b16 %v491
  %v512 = vpack.c.b16 %v505, %v504
  %v513 = vpack.c.b16 %v507, %v506
  %v514 = vpack.c.b16 %v509, %v508
  %v515 = vpack.c.b16 %v511, %v510
  %vm520 = vcmask 523264
  %v522 = vsel %vm520, %v468, 0
  %v525 = vsel %vm520, %v469, 0
  %v528 = vsel %vm520, %v470, 0
  %v531 = vsel %vm520, %v471, 0
  %v534 = vsel %vm520, %v472, 0
  %v537 = vsel %vm520, %v473, 0
  %v540 = vsel %vm520, %v474, 0
  %v543 = vsel %vm520, %v475, 0
  %v546 = vsel %vm520, %v476, 0
  %v549 = vsel %vm520, %v477, 0
  %v552 = vsel %vm520, %v478, 0
  %v555 = vsel %vm520, %v479, 0
  %v558 = vsel %vm520, %v480, 0
  %v561 = vsel %vm520, %v481, 0
  %v564 = vsel %vm520, %v482, 0
  %v567 = vsel %vm520, %v483, 0
  %569 = vmatpush.bf16.msra.mxu0 0
  %570 = vmatpush.bf16.msra.mxu0 0
  %571 = vmatpush.bf16.msra.mxu0 0
  %572 = vmatpush.bf16.msra.mxu0 0
  %573 = vmatpush.bf16.msra.mxu0 %v515
  %574 = vmatpush.bf16.msra.mxu0 %v514
  %575 = vmatpush.bf16.msra.mxu0 %v513
  %576 = vmatpush.bf16.msra.mxu0 %v512
  %577 = vmatmul.bf16.gmra.mxu0 %v522
  %v578 = vpop.f32.mrf.mxu0
  %v579 = vadd.f32 %v494, %v578
  %v580 = vpop.f32.mrf.mxu0
  %v581 = vadd.f32 %v494, %v580
  %582 = vmatmul.bf16.gmra.mxu0 %v525
  %v583 = vpop.f32.mrf.mxu0
  %v584 = vadd.f32 %v494, %v583
  %v585 = vpop.f32.mrf.mxu0
  %v586 = vadd.f32 %v494, %v585
  %587 = vmatmul.bf16.gmra.mxu0 %v528
  %v588 = vpop.f32.mrf.mxu0
  %v589 = vadd.f32 %v494, %v588
  %v590 = vpop.f32.mrf.mxu0
  %v591 = vadd.f32 %v494, %v590
  %592 = vmatmul.bf16.gmra.mxu0 %v531
  %v593 = vpop.f32.mrf.mxu0
  %v594 = vadd.f32 %v494, %v593
  %v595 = vpop.f32.mrf.mxu0
  %v596 = vadd.f32 %v494, %v595
  %597 = vmatmul.bf16.gmra.mxu0 %v534
  %v598 = vpop.f32.mrf.mxu0
  %v599 = vadd.f32 %v494, %v598
  %v600 = vpop.f32.mrf.mxu0
  %v601 = vadd.f32 %v494, %v600
  %602 = vmatmul.bf16.gmra.mxu0 %v537
  %v603 = vpop.f32.mrf.mxu0
  %v604 = vadd.f32 %v494, %v603
  %v605 = vpop.f32.mrf.mxu0
  %v606 = vadd.f32 %v494, %v605
  %607 = vmatmul.bf16.gmra.mxu0 %v540
  %v608 = vpop.f32.mrf.mxu0
  %v609 = vadd.f32 %v494, %v608
  %v610 = vpop.f32.mrf.mxu0
  %v611 = vadd.f32 %v494, %v610
  %612 = vmatmul.bf16.gmra.mxu0 %v543
  %v613 = vpop.f32.mrf.mxu0
  %v614 = vadd.f32 %v494, %v613
  %v615 = vpop.f32.mrf.mxu0
  %v616 = vadd.f32 %v494, %v615
  %617 = vmatmul.bf16.gmra.mxu0 %v546
  %v618 = vpop.f32.mrf.mxu0
  %v619 = vadd.f32 %v494, %v618
  %v620 = vpop.f32.mrf.mxu0
  %v621 = vadd.f32 %v494, %v620
  %622 = vmatmul.bf16.gmra.mxu0 %v549
  %v623 = vpop.f32.mrf.mxu0
  %v624 = vadd.f32 %v494, %v623
  %v625 = vpop.f32.mrf.mxu0
  %v626 = vadd.f32 %v494, %v625
  %627 = vmatmul.bf16.gmra.mxu0 %v552
  %v628 = vpop.f32.mrf.mxu0
  %v629 = vadd.f32 %v494, %v628
  %v630 = vpop.f32.mrf.mxu0
  %v631 = vadd.f32 %v494, %v630
  %632 = vmatmul.bf16.gmra.mxu0 %v555
  %v633 = vpop.f32.mrf.mxu0
  %v634 = vadd.f32 %v494, %v633
  %v635 = vpop.f32.mrf.mxu0
  %v636 = vadd.f32 %v494, %v635
  %637 = vmatmul.bf16.gmra.mxu0 %v558
  %v638 = vpop.f32.mrf.mxu0
  %v639 = vadd.f32 %v494, %v638
  %v640 = vpop.f32.mrf.mxu0
  %v641 = vadd.f32 %v494, %v640
  %642 = vmatmul.bf16.gmra.mxu0 %v561
  %v643 = vpop.f32.mrf.mxu0
  %v644 = vadd.f32 %v494, %v643
  %v645 = vpop.f32.mrf.mxu0
  %v646 = vadd.f32 %v494, %v645
  %647 = vmatmul.bf16.gmra.mxu0 %v564
  %v648 = vpop.f32.mrf.mxu0
  %v649 = vadd.f32 %v494, %v648
  %v650 = vpop.f32.mrf.mxu0
  %v651 = vadd.f32 %v494, %v650
  %652 = vmatmul.bf16.gmra.mxu0 %v567
  %v653 = vpop.f32.mrf.mxu0
  %v654 = vadd.f32 %v494, %v653
  %v655 = vpop.f32.mrf.mxu0
  %v656 = vadd.f32 %v494, %v655
  %657 = vdwg.mxu0
  %v658 = vmax.f32 %v579, 0.0
  %v659 = vmax.f32 %v581, 0.0
  %v660 = vmax.f32 %v584, 0.0
  %v661 = vmax.f32 %v586, 0.0
  %v662 = vmax.f32 %v589, 0.0
  %v663 = vmax.f32 %v591, 0.0
  %v664 = vmax.f32 %v594, 0.0
  %v665 = vmax.f32 %v596, 0.0
  %v666 = vmax.f32 %v599, 0.0
  %v667 = vmax.f32 %v601, 0.0
  %v668 = vmax.f32 %v604, 0.0
  %v669 = vmax.f32 %v606, 0.0
  %v670 = vmax.f32 %v609, 0.0
  %v671 = vmax.f32 %v611, 0.0
  %v672 = vmax.f32 %v614, 0.0
  %v673 = vmax.f32 %v616, 0.0
  %v674 = vmax.f32 %v619, 0.0
  %v675 = vmax.f32 %v621, 0.0
  %v676 = vmax.f32 %v624, 0.0
  %v677 = vmax.f32 %v626, 0.0
  %v678 = vmax.f32 %v629, 0.0
  %v679 = vmax.f32 %v631, 0.0
  %v680 = vmax.f32 %v634, 0.0
  %v681 = vmax.f32 %v636, 0.0
  %v682 = vmax.f32 %v639, 0.0
  %v683 = vmax.f32 %v641, 0.0
  %v684 = vmax.f32 %v644, 0.0
  %v685 = vmax.f32 %v646, 0.0
  %v686 = vmax.f32 %v649, 0.0
  %v687 = vmax.f32 %v651, 0.0
  %v688 = vmax.f32 %v654, 0.0
  %v689 = vmax.f32 %v656, 0.0
  %v690 = vpack.c.bf16 %v659, %v658
  %v691 = vpack.c.bf16 %v661, %v660
  %v692 = vpack.c.bf16 %v663, %v662
  %v693 = vpack.c.bf16 %v665, %v664
  %v694 = vpack.c.bf16 %v667, %v666
  %v695 = vpack.c.bf16 %v669, %v668
  %v696 = vpack.c.bf16 %v671, %v670
  %v697 = vpack.c.bf16 %v673, %v672
  %v698 = vpack.c.bf16 %v675, %v674
  %v699 = vpack.c.bf16 %v677, %v676
  %v700 = vpack.c.bf16 %v679, %v678
  %v701 = vpack.c.bf16 %v681, %v680
  %v702 = vpack.c.bf16 %v683, %v682
  %v703 = vpack.c.bf16 %v685, %v684
  %v704 = vpack.c.bf16 %v687, %v686
  %v705 = vpack.c.bf16 %v689, %v688
  %v706 = vld [vmem:[%s7] sm:$0xf]
  %v707 = vld [vmem:[%s7 + $0x4] sm:$0xf]
  %v708 = vld [vmem:[%s7 + $0x8] sm:$0xf]
  %v709 = vld [vmem:[%s7 + $0xc] sm:$0xf]
  %v710 = vld [vmem:[%s8] sm:$0x1]
  %v712 = vperm.slane %v710, 0
  %v718 = vunpack.c.l.b16 %v706
  %v719 = vunpack.c.l.b16 %v707
  %v720 = vunpack.c.l.b16 %v708
  %v721 = vunpack.c.l.b16 %v709
  %v722 = vpack.c.b16 %v719, %v718
  %v723 = vpack.c.b16 %v721, %v720
  %vm726 = vcmask 261120
  %v728 = vsel %vm726, %v690, 0
  %v731 = vsel %vm726, %v691, 0
  %v734 = vsel %vm726, %v692, 0
  %v737 = vsel %vm726, %v693, 0
  %v740 = vsel %vm726, %v694, 0
  %v743 = vsel %vm726, %v695, 0
  %v746 = vsel %vm726, %v696, 0
  %v749 = vsel %vm726, %v697, 0
  %v752 = vsel %vm726, %v698, 0
  %v755 = vsel %vm726, %v699, 0
  %v758 = vsel %vm726, %v700, 0
  %v761 = vsel %vm726, %v701, 0
  %v764 = vsel %vm726, %v702, 0
  %v767 = vsel %vm726, %v703, 0
  %v770 = vsel %vm726, %v704, 0
  %v773 = vsel %vm726, %v705, 0
  %775 = vmatpush.bf16.msra.mxu0 0
  %776 = vmatpush.bf16.msra.mxu0 0
  %777 = vmatpush.bf16.msra.mxu0 0
  %778 = vmatpush.bf16.msra.mxu0 0
  %779 = vmatpush.bf16.msra.mxu0 0
  %780 = vmatpush.bf16.msra.mxu0 0
  %781 = vmatpush.bf16.msra.mxu0 %v723
  %782 = vmatpush.bf16.msra.mxu0 %v722
  %783 = vmatmul.bf16.gmra.mxu0 %v728
  %v784 = vpop.f32.mrf.mxu0
  %v785 = vadd.f32 %v712, %v784
  %v786 = vpop.f32.mrf.mxu0
  %v787 = vadd.f32 %v712, %v786
  %788 = vmatmul.bf16.gmra.mxu0 %v731
  %v789 = vpop.f32.mrf.mxu0
  %v790 = vadd.f32 %v712, %v789
  %v791 = vpop.f32.mrf.mxu0
  %v792 = vadd.f32 %v712, %v791
  %793 = vmatmul.bf16.gmra.mxu0 %v734
  %v794 = vpop.f32.mrf.mxu0
  %v795 = vadd.f32 %v712, %v794
  %v796 = vpop.f32.mrf.mxu0
  %v797 = vadd.f32 %v712, %v796
  %798 = vmatmul.bf16.gmra.mxu0 %v737
  %v799 = vpop.f32.mrf.mxu0
  %v800 = vadd.f32 %v712, %v799
  %v801 = vpop.f32.mrf.mxu0
  %v802 = vadd.f32 %v712, %v801
  %803 = vmatmul.bf16.gmra.mxu0 %v740
  %v804 = vpop.f32.mrf.mxu0
  %v805 = vadd.f32 %v712, %v804
  %v806 = vpop.f32.mrf.mxu0
  %v807 = vadd.f32 %v712, %v806
  %808 = vmatmul.bf16.gmra.mxu0 %v743
  %v809 = vpop.f32.mrf.mxu0
  %v810 = vadd.f32 %v712, %v809
  %v811 = vpop.f32.mrf.mxu0
  %v812 = vadd.f32 %v712, %v811
  %813 = vmatmul.bf16.gmra.mxu0 %v746
  %v814 = vpop.f32.mrf.mxu0
  %v815 = vadd.f32 %v712, %v814
  %v816 = vpop.f32.mrf.mxu0
  %v817 = vadd.f32 %v712, %v816
  %818 = vmatmul.bf16.gmra.mxu0 %v749
  %v819 = vpop.f32.mrf.mxu0
  %v820 = vadd.f32 %v712, %v819
  %v821 = vpop.f32.mrf.mxu0
  %v822 = vadd.f32 %v712, %v821
  %823 = vmatmul.bf16.gmra.mxu0 %v752
  %v824 = vpop.f32.mrf.mxu0
  %v825 = vadd.f32 %v712, %v824
  %v826 = vpop.f32.mrf.mxu0
  %v827 = vadd.f32 %v712, %v826
  %828 = vmatmul.bf16.gmra.mxu0 %v755
  %v829 = vpop.f32.mrf.mxu0
  %v830 = vadd.f32 %v712, %v829
  %v831 = vpop.f32.mrf.mxu0
  %v832 = vadd.f32 %v712, %v831
  %833 = vmatmul.bf16.gmra.mxu0 %v758
  %v834 = vpop.f32.mrf.mxu0
  %v835 = vadd.f32 %v712, %v834
  %v836 = vpop.f32.mrf.mxu0
  %v837 = vadd.f32 %v712, %v836
  %838 = vmatmul.bf16.gmra.mxu0 %v761
  %v839 = vpop.f32.mrf.mxu0
  %v840 = vadd.f32 %v712, %v839
  %v841 = vpop.f32.mrf.mxu0
  %v842 = vadd.f32 %v712, %v841
  %843 = vmatmul.bf16.gmra.mxu0 %v764
  %v844 = vpop.f32.mrf.mxu0
  %v845 = vadd.f32 %v712, %v844
  %v846 = vpop.f32.mrf.mxu0
  %v847 = vadd.f32 %v712, %v846
  %848 = vmatmul.bf16.gmra.mxu0 %v767
  %v849 = vpop.f32.mrf.mxu0
  %v850 = vadd.f32 %v712, %v849
  %v851 = vpop.f32.mrf.mxu0
  %v852 = vadd.f32 %v712, %v851
  %853 = vmatmul.bf16.gmra.mxu0 %v770
  %v854 = vpop.f32.mrf.mxu0
  %v855 = vadd.f32 %v712, %v854
  %v856 = vpop.f32.mrf.mxu0
  %v857 = vadd.f32 %v712, %v856
  %858 = vmatmul.bf16.gmra.mxu0 %v773
  %v859 = vpop.f32.mrf.mxu0
  %v860 = vadd.f32 %v712, %v859
  %v861 = vpop.f32.mrf.mxu0
  %v862 = vadd.f32 %v712, %v861
  %863 = vdwg.mxu0
  %v864 = vsub.f32 0.0, %v785
  %v865 = vsub.f32 0.0, %v787
  %v866 = vsub.f32 0.0, %v790
  %v867 = vsub.f32 0.0, %v792
  %v868 = vsub.f32 0.0, %v795
  %v869 = vsub.f32 0.0, %v797
  %v870 = vsub.f32 0.0, %v800
  %v871 = vsub.f32 0.0, %v802
  %v872 = vsub.f32 0.0, %v805
  %v873 = vsub.f32 0.0, %v807
  %v874 = vsub.f32 0.0, %v810
  %v875 = vsub.f32 0.0, %v812
  %v876 = vsub.f32 0.0, %v815
  %v877 = vsub.f32 0.0, %v817
  %v878 = vsub.f32 0.0, %v820
  %v879 = vsub.f32 0.0, %v822
  %v880 = vsub.f32 0.0, %v825
  %v881 = vsub.f32 0.0, %v827
  %v882 = vsub.f32 0.0, %v830
  %v883 = vsub.f32 0.0, %v832
  %v884 = vsub.f32 0.0, %v835
  %v885 = vsub.f32 0.0, %v837
  %v886 = vsub.f32 0.0, %v840
  %v887 = vsub.f32 0.0, %v842
  %v888 = vsub.f32 0.0, %v845
  %v889 = vsub.f32 0.0, %v847
  %v890 = vsub.f32 0.0, %v850
  %v891 = vsub.f32 0.0, %v852
  %v892 = vsub.f32 0.0, %v855
  %v893 = vsub.f32 0.0, %v857
  %v894 = vsub.f32 0.0, %v860
  %v895 = vsub.f32 0.0, %v862
  %v896 = vmul.f32 %v864, 1.442695
  %v897 = vpow.pop %v896
  %v898 = vmul.f32 %v865, 1.442695
  %v899 = vpow.pop %v898
  %v900 = vmul.f32 %v866, 1.442695
  %v901 = vpow.pop %v900
  %v902 = vmul.f32 %v867, 1.442695
  %v903 = vpow.pop %v902
  %v904 = vmul.f32 %v868, 1.442695
  %v905 = vpow.pop %v904
  %v906 = vmul.f32 %v869, 1.442695
  %v907 = vpow.pop %v906
  %v908 = vmul.f32 %v870, 1.442695
  %v909 = vpow.pop %v908
  %v910 = vmul.f32 %v871, 1.442695
  %v911 = vpow.pop %v910
  %v912 = vmul.f32 %v872, 1.442695
  %v913 = vpow.pop %v912
  %v914 = vmul.f32 %v873, 1.442695
  %v915 = vpow.pop %v914
  %v916 = vmul.f32 %v874, 1.442695
  %v917 = vpow.pop %v916
  %v918 = vmul.f32 %v875, 1.442695
  %v919 = vpow.pop %v918
  %v920 = vmul.f32 %v876, 1.442695
  %v921 = vpow.pop %v920
  %v922 = vmul.f32 %v877, 1.442695
  %v923 = vpow.pop %v922
  %v924 = vmul.f32 %v878, 1.442695
  %v925 = vpow.pop %v924
  %v926 = vmul.f32 %v879, 1.442695
  %v927 = vpow.pop %v926
  %v928 = vmul.f32 %v880, 1.442695
  %v929 = vpow.pop %v928
  %v930 = vmul.f32 %v881, 1.442695
  %v931 = vpow.pop %v930
  %v932 = vmul.f32 %v882, 1.442695
  %v933 = vpow.pop %v932
  %v934 = vmul.f32 %v883, 1.442695
  %v935 = vpow.pop %v934
  %v936 = vmul.f32 %v884, 1.442695
  %v937 = vpow.pop %v936
  %v938 = vmul.f32 %v885, 1.442695
  %v939 = vpow.pop %v938
  %v940 = vmul.f32 %v886, 1.442695
  %v941 = vpow.pop %v940
  %v942 = vmul.f32 %v887, 1.442695
  %v943 = vpow.pop %v942
  %v944 = vmul.f32 %v888, 1.442695
  %v945 = vpow.pop %v944
  %v946 = vmul.f32 %v889, 1.442695
  %v947 = vpow.pop %v946
  %v948 = vmul.f32 %v890, 1.442695
  %v949 = vpow.pop %v948
  %v950 = vmul.f32 %v891, 1.442695
  %v951 = vpow.pop %v950
  %v952 = vmul.f32 %v892, 1.442695
  %v953 = vpow.pop %v952
  %v954 = vmul.f32 %v893, 1.442695
  %v955 = vpow.pop %v954
  %v956 = vmul.f32 %v894, 1.442695
  %v957 = vpow.pop %v956
  %v958 = vmul.f32 %v895, 1.442695
  %v959 = vpow.pop %v958
  %v960 = vadd.f32 %v897, 1.0
  %v961 = vadd.f32 %v899, 1.0
  %v962 = vadd.f32 %v901, 1.0
  %v963 = vadd.f32 %v903, 1.0
  %v964 = vadd.f32 %v905, 1.0
  %v965 = vadd.f32 %v907, 1.0
  %v966 = vadd.f32 %v909, 1.0
  %v967 = vadd.f32 %v911, 1.0
  %v968 = vadd.f32 %v913, 1.0
  %v969 = vadd.f32 %v915, 1.0
  %v970 = vadd.f32 %v917, 1.0
  %v971 = vadd.f32 %v919, 1.0
  %v972 = vadd.f32 %v921, 1.0
  %v973 = vadd.f32 %v923, 1.0
  %v974 = vadd.f32 %v925, 1.0
  %v975 = vadd.f32 %v927, 1.0
  %v976 = vadd.f32 %v929, 1.0
  %v977 = vadd.f32 %v931, 1.0
  %v978 = vadd.f32 %v933, 1.0
  %v979 = vadd.f32 %v935, 1.0
  %v980 = vadd.f32 %v937, 1.0
  %v981 = vadd.f32 %v939, 1.0
  %v982 = vadd.f32 %v941, 1.0
  %v983 = vadd.f32 %v943, 1.0
  %v984 = vadd.f32 %v945, 1.0
  %v985 = vadd.f32 %v947, 1.0
  %v986 = vadd.f32 %v949, 1.0
  %v987 = vadd.f32 %v951, 1.0
  %v988 = vadd.f32 %v953, 1.0
  %v989 = vadd.f32 %v955, 1.0
  %v990 = vadd.f32 %v957, 1.0
  %v991 = vadd.f32 %v959, 1.0
  %v992 = vrcp.pop %v960
  %v993 = vrcp.pop %v961
  %v994 = vrcp.pop %v962
  %v995 = vrcp.pop %v963
  %v996 = vrcp.pop %v964
  %v997 = vrcp.pop %v965
  %v998 = vrcp.pop %v966
  %v999 = vrcp.pop %v967
  %v1000 = vrcp.pop %v968
  %v1001 = vrcp.pop %v969
  %v1002 = vrcp.pop %v970
  %v1003 = vrcp.pop %v971
  %v1004 = vrcp.pop %v972
  %v1005 = vrcp.pop %v973
  %v1006 = vrcp.pop %v974
  %v1007 = vrcp.pop %v975
  %v1008 = vrcp.pop %v976
  %v1009 = vrcp.pop %v977
  %v1010 = vrcp.pop %v978
  %v1011 = vrcp.pop %v979
  %v1012 = vrcp.pop %v980
  %v1013 = vrcp.pop %v981
  %v1014 = vrcp.pop %v982
  %v1015 = vrcp.pop %v983
  %v1016 = vrcp.pop %v984
  %v1017 = vrcp.pop %v985
  %v1018 = vrcp.pop %v986
  %v1019 = vrcp.pop %v987
  %v1020 = vrcp.pop %v988
  %v1021 = vrcp.pop %v989
  %v1022 = vrcp.pop %v990
  %v1023 = vrcp.pop %v991
  %vm1024 = vcmask 64512
  %1025 = vst.msk [vmem:[%s9] sm:$0xff] %vm1024, %v992
  %1026 = vst.msk [vmem:[%s9 + $0x8] sm:$0xff] %vm1024, %v993
  %1027 = vst.msk [vmem:[%s9 + $0x10] sm:$0xff] %vm1024, %v994
  %1028 = vst.msk [vmem:[%s9 + $0x18] sm:$0xff] %vm1024, %v995
  %1029 = vst.msk [vmem:[%s9 + $0x20] sm:$0xff] %vm1024, %v996
  %1030 = vst.msk [vmem:[%s9 + $0x28] sm:$0xff] %vm1024, %v997
  %1031 = vst.msk [vmem:[%s9 + $0x30] sm:$0xff] %vm1024, %v998
  %1032 = vst.msk [vmem:[%s9 + $0x38] sm:$0xff] %vm1024, %v999
  %1033 = vst.msk [vmem:[%s9 + $0x40] sm:$0xff] %vm1024, %v1000
  %1034 = vst.msk [vmem:[%s9 + $0x48] sm:$0xff] %vm1024, %v1001
  %1035 = vst.msk [vmem:[%s9 + $0x50] sm:$0xff] %vm1024, %v1002
  %1036 = vst.msk [vmem:[%s9 + $0x58] sm:$0xff] %vm1024, %v1003
  %1037 = vst.msk [vmem:[%s9 + $0x60] sm:$0xff] %vm1024, %v1004
  %1038 = vst.msk [vmem:[%s9 + $0x68] sm:$0xff] %vm1024, %v1005
  %1039 = vst.msk [vmem:[%s9 + $0x70] sm:$0xff] %vm1024, %v1006
  %1040 = vst.msk [vmem:[%s9 + $0x78] sm:$0xff] %vm1024, %v1007
  %1041 = vst.msk [vmem:[%s9 + $0x80] sm:$0xff] %vm1024, %v1008
  %1042 = vst.msk [vmem:[%s9 + $0x88] sm:$0xff] %vm1024, %v1009
  %1043 = vst.msk [vmem:[%s9 + $0x90] sm:$0xff] %vm1024, %v1010
  %1044 = vst.msk [vmem:[%s9 + $0x98] sm:$0xff] %vm1024, %v1011
  %1045 = vst.msk [vmem:[%s9 + $0xa0] sm:$0xff] %vm1024, %v1012
  %1046 = vst.msk [vmem:[%s9 + $0xa8] sm:$0xff] %vm1024, %v1013
  %1047 = vst.msk [vmem:[%s9 + $0xb0] sm:$0xff] %vm1024, %v1014
  %1048 = vst.msk [vmem:[%s9 + $0xb8] sm:$0xff] %vm1024, %v1015
  %1049 = vst.msk [vmem:[%s9 + $0xc0] sm:$0xff] %vm1024, %v1016
  %1050 = vst.msk [vmem:[%s9 + $0xc8] sm:$0xff] %vm1024, %v1017
  %1051 = vst.msk [vmem:[%s9 + $0xd0] sm:$0xff] %vm1024, %v1018
  %1052 = vst.msk [vmem:[%s9 + $0xd8] sm:$0xff] %vm1024, %v1019
  %1053 = vst.msk [vmem:[%s9 + $0xe0] sm:$0xff] %vm1024, %v1020
  %1054 = vst.msk [vmem:[%s9 + $0xe8] sm:$0xff] %vm1024, %v1021
  %1055 = vst.msk [vmem:[%s9 + $0xf0] sm:$0xff] %vm1024, %v1022
  %1056 = vst.msk [vmem:[%s9 + $0xf8] sm:$0xff] %vm1024, %v1023
  // Predicated region
  $region38: #{neuralnetwork_forward.1} parent=0 // pred_check
    _
  $region39: #{neuralnetwork_forward.1} parent=0 // pred_check_branch
    %1058 = sbr.rel (0) target = $region41
  $region40: #{neuralnetwork_forward.1} parent=0 // pred_region
    _
  $region41: #{neuralnetwork_forward.1} parent=0 // pred_fallthru
    _
  // Predicated region
  $region42: #{neuralnetwork_forward.1} parent=0 // pred_check
    _
  $region43: #{neuralnetwork_forward.1} parent=0 // pred_check_branch
    %1060 = sbr.rel (0) target = $region45
  $region44: #{neuralnetwork_forward.1} parent=0 // pred_region
    _
  $region45: #{neuralnetwork_forward.1} parent=0 // pred_fallthru
    _

</llo_original>
